<compile_context>
chip_gen: v5e
topology: v5e:2x2
jax: 0.10.0
libtpu: 0.0.40
codegen_flags: <defaults>
</compile_context>

<pallas_src>
import jax
import jax.numpy as jnp
from jax.experimental import pallas as pl
from jax.experimental.pallas import tpu as pltpu


def _gated_block_kernel(x_ref, halo_ref, wsg_ref, bsg_ref, wo_ref, bo_ref,
                        out_ref):
    # x_ref   : (B_t, C_res, L_t)      current sequence tile
    # halo_ref: (B_t, C_res, H)        last H lanes of the previous tile
    # wsg_ref : (2*C_gate, K*C_res)    fused signal|gate weights (tap-major cols)
    # bsg_ref : (2*C_gate, 1)
    # wo_ref  : (C_res, C_gate)        1x1 output conv weight
    # bo_ref  : (C_res, 1)
    # out_ref : (B_t, C_res, L_t)
    b_t, c_res, l_t = x_ref.shape
    h = halo_ref.shape[-1]
    two_g = wsg_ref.shape[0]
    c_gate = two_g // 2
    kc = wsg_ref.shape[1]
    k_taps = kc // c_res

    # First sequence tile: causal zero padding instead of the halo contents.
    halo_scale = (pl.program_id(1) > 0).astype(jnp.float32)

    x = x_ref[...].astype(jnp.float32)                        # (B_t, C, L_t)
    x2 = x.reshape(b_t * c_res, l_t)                          # rows = (b, c)
    halo2 = halo_ref[...].astype(jnp.float32).reshape(b_t * c_res, h)
    halo2 = halo2 * halo_scale

    lane_h = jax.lax.broadcasted_iota(jnp.int32, (b_t * c_res, h), 1)

    shifted = [x]
    for s in range(1, k_taps):                                # K is small & static
        xs = pltpu.roll(x2, shift=s, axis=1)                  # lanes [s,L_t): x[t-s]
        hs = pltpu.roll(halo2, shift=s, axis=1)               # lanes [0,s): prev tail
        if h == l_t:
            xs = jnp.where(lane_h < s, hs, xs)
        else:
            # Splice the halo into the first (aligned, 128-lane) window only.
            head = jnp.where(lane_h < s, hs, xs[:, :h])
            xs = jnp.concatenate([head, xs[:, h:]], axis=1)
        shifted.append(xs.reshape(b_t, c_res, l_t))
    xstack = jnp.concatenate(shifted, axis=1)                 # (B_t, K*C, L_t)

    # Fused signal|gate causal conv: one batched MXU contraction over K*C.
    wsg = jnp.broadcast_to(wsg_ref[...].astype(jnp.float32)[None],
                           (b_t, two_g, kc))
    acc = jnp.einsum("bgc,bcl->bgl", wsg, xstack,
                     preferred_element_type=jnp.float32)
    acc = acc + bsg_ref[...].astype(jnp.float32)[None]        # once per block

    gated = jax.nn.relu(acc[:, :c_gate, :]) * jax.nn.sigmoid(acc[:, c_gate:, :])

    wo = jnp.broadcast_to(wo_ref[...].astype(jnp.float32)[None],
                          (b_t, c_res, c_gate))
    y = jnp.einsum("boc,bcl->bol", wo, gated,
                   preferred_element_type=jnp.float32)
    y = y + bo_ref[...].astype(jnp.float32)[None]

    out_ref[...] = (x + y).astype(out_ref.dtype)              # residual, lane-dense


def _choose_tiles(B, c_res, L, *, max_l_tile=2048,
                  block_budget_bytes=512 * 1024, elem_bytes=4):
    """Large tiles (amortize ~0.35us/step overhead) bounded so the
    double-buffered blocks + in-kernel temporaries fit VMEM on v5e/v6e/v7x."""
    if L <= max_l_tile:
        l_tile = L
    else:
        cap = max(128, max_l_tile - max_l_tile % 128)
        l_tile = 0
        for t in range(cap, 0, -128):
            if L % t == 0:
                l_tile = t
                break
        if l_tile == 0:
            # Awkward L: fixed 128-multiple tile; the partial last block is
            # masked on store and only contaminates dropped columns (causal).
            l_tile = cap
    max_b = max(1, block_budget_bytes // (c_res * l_tile * elem_bytes))
    b_tile = 1
    for bt in range(min(B, max_b), 0, -1):      # single TC (v5e/v6e): take as
        if B % bt == 0:                         # much batch per step as fits
            b_tile = bt
            break
    return b_tile, l_tile


def gated_block(x, w_signal, b_signal, w_gate, b_gate, w_out, b_out,
                *, max_l_tile=2048):
    """x: (B, C_res, L) in the PyTorch NCL layout.  Conv weights use the
    PyTorch Conv1d layout: w_signal/w_gate (C_gate, C_res, K), w_out
    (C_res, C_gate, 1); biases 1-D."""
    B, c_res, L = x.shape
    c_gate, _, K = w_signal.shape

    # Fuse signal|gate weights; re-index taps by causal shift s (= K-1-k) and
    # flatten tap-major so a single MXU contraction covers all K taps.
    w_fused = jnp.concatenate([w_signal, w_gate], axis=0)          # (2G, C, K)
    wsg = jnp.transpose(w_fused[:, :, ::-1], (2, 0, 1))            # (K, 2G, C)
    wsg_flat = jnp.transpose(wsg, (1, 0, 2)).reshape(2 * c_gate, K * c_res)
    bsg = jnp.concatenate([b_signal, b_gate]).reshape(2 * c_gate, 1)
    wo = w_out[:, :, 0]                                            # (C_res, C_gate)
    bo = b_out.reshape(c_res, 1)

    b_tile, l_tile = _choose_tiles(B, c_res, L, max_l_tile=max_l_tile)
    halo_w = min(128, l_tile)          # only K-1 (<128) trailing lanes are used
    hpb = l_tile // halo_w             # halo blocks per sequence tile
    grid = (B // b_tile, pl.cdiv(L, l_tile))

    def x_map(b, l):
        return (b, 0, l)

    def halo_map(b, l):
        # Last halo_w elements of the previous sequence tile; clamped at l==0
        # (the kernel zeroes the halo contribution for the first tile).
        return (b, 0, jnp.maximum(l * hpb - 1, 0))

    def const_map(b, l):
        return (0, 0)

    return pl.pallas_call(
        _gated_block_kernel,
        out_shape=jax.ShapeDtypeStruct((B, c_res, L), x.dtype),
        grid_spec=pltpu.PrefetchScalarGridSpec(
            num_scalar_prefetch=0,
            grid=grid,
            in_specs=[
                pl.BlockSpec((b_tile, c_res, l_tile), x_map),
                pl.BlockSpec((b_tile, c_res, halo_w), halo_map),
                pl.BlockSpec((2 * c_gate, K * c_res), const_map),
                pl.BlockSpec((2 * c_gate, 1), const_map),
                pl.BlockSpec((c_res, c_gate), const_map),
                pl.BlockSpec((c_res, 1), const_map),
            ],
            out_specs=pl.BlockSpec((b_tile, c_res, l_tile), x_map),
        ),
        compiler_params=pltpu.CompilerParams(
            # No carried state across grid steps -> both axes parallel
            # (megacore sharding on v7x); explicit VMEM budget (fits v7x 64MiB).
            dimension_semantics=("parallel", "parallel"),
            vmem_limit_bytes=32 * 1024 * 1024,
        ),
    )(x, x, wsg_flat, bsg, wo, bo)


def _reference(x, w_s, b_s, w_g, b_g, w_o, b_o):
    """Pure-JAX mirror of the PyTorch forward (NCL layout)."""
    B, C, L = x.shape
    K = w_s.shape[-1]
    xpad = jnp.pad(x, ((0, 0), (0, 0), (K - 1, 0)))
    sig = sum(jnp.einsum("oc,bcl->bol", w_s[:, :, k], xpad[:, :, k:k + L])
              for k in range(K)) + b_s[None, :, None]
    gat = sum(jnp.einsum("oc,bcl->bol", w_g[:, :, k], xpad[:, :, k:k + L])
              for k in range(K)) + b_g[None, :, None]
    h = jax.nn.relu(sig) * jax.nn.sigmoid(gat)
    y = jnp.einsum("oc,bcl->bol", w_o[:, :, 0], h) + b_o[None, :, None]
    return x + y


def _make_params(key, residual_channels, gate_channels, kernels):
    k1, k2, k3, k4, k5, k6 = jax.random.split(key, 6)
    w_signal = 0.1 * jax.random.normal(
        k1, (gate_channels, residual_channels, kernels), jnp.float32)
    b_signal = 0.1 * jax.random.normal(k2, (gate_channels,), jnp.float32)
    w_gate = 0.1 * jax.random.normal(
        k3, (gate_channels, residual_channels, kernels), jnp.float32)
    b_gate = 0.1 * jax.random.normal(k4, (gate_channels,), jnp.float32)
    w_out = 0.1 * jax.random.normal(
        k5, (residual_channels, gate_channels, 1), jnp.float32)
    b_out = 0.1 * jax.random.normal(k6, (residual_channels,), jnp.float32)
    return w_signal, b_signal, w_gate, b_gate, w_out, b_out


if __name__ == "__main__":
    residual_channels = 8
    gate_channels = 16
    kernels = 3

    key = jax.random.PRNGKey(0)
    kp, kx1, kx2 = jax.random.split(key, 3)
    params = _make_params(kp, residual_channels, gate_channels, kernels)

    # 1) Small shape consistent with the module (single sequence tile).
    batch, seq = 2, 16
    x1 = jax.random.normal(kx1, (batch, residual_channels, seq), jnp.float32)
    out1 = jax.block_until_ready(gated_block(x1, *params))
    ref1 = _reference(x1, *params)
    assert out1.shape == (batch, residual_channels, seq)
    assert jnp.max(jnp.abs(out1 - ref1)) < 1e-4

    # 2) Multi-tile check: exercises the cross-tile causal halo path
    #    (max_l_tile forced small so L=512 splits into two 256-lane tiles).
    seq2 = 512
    x2 = jax.random.normal(kx2, (batch, residual_channels, seq2), jnp.float32)
    out2 = jax.block_until_ready(gated_block(x2, *params, max_l_tile=256))
    ref2 = _reference(x2, *params)
    assert out2.shape == (batch, residual_channels, seq2)
    assert jnp.max(jnp.abs(out2 - ref2)) < 1e-4

    print("KERNEL_OK")
</pallas_src>

<mosaic_0001>
module attributes {stable_mosaic.version = 11 : i64} {
  func.func @_gated_block_kernel(%arg0: i32, %arg1: i32, %arg2: memref<2x8x16xf32, #tpu.memory_space<vmem>>, %arg3: memref<2x8x16xf32, #tpu.memory_space<vmem>>, %arg4: memref<32x24xf32, #tpu.memory_space<vmem>>, %arg5: memref<32x1xf32, #tpu.memory_space<vmem>>, %arg6: memref<8x16xf32, #tpu.memory_space<vmem>>, %arg7: memref<8x1xf32, #tpu.memory_space<vmem>>, %arg8: memref<2x8x16xf32, #tpu.memory_space<vmem>>) attributes {dimension_semantics = [#tpu.dimension_semantics<parallel>, #tpu.dimension_semantics<parallel>], iteration_bounds = array<i64: 1, 1>, scalar_prefetch = 0 : i64, scratch_operands = 0 : i64, tpu.core_type = #tpu.core_type<tc>, window_params = [{transform_indices = @transform_0, window_bounds = array<i64: 2, 8, 16>}, {transform_indices = @transform_1, window_bounds = array<i64: 2, 8, 16>}, {pipeline_mode = #tpu.pipeline_mode<synchronous>, transform_indices = @transform_2, window_bounds = array<i64: 32, 24>}, {pipeline_mode = #tpu.pipeline_mode<synchronous>, transform_indices = @transform_3, window_bounds = array<i64: 32, 1>}, {pipeline_mode = #tpu.pipeline_mode<synchronous>, transform_indices = @transform_4, window_bounds = array<i64: 8, 16>}, {pipeline_mode = #tpu.pipeline_mode<synchronous>, transform_indices = @transform_5, window_bounds = array<i64: 8, 1>}, {transform_indices = @transform_6, window_bounds = array<i64: 2, 8, 16>}]} {
    %c0_i32 = arith.constant 0 : i32
    %0 = arith.cmpi sgt, %arg1, %c0_i32 : i32
    %1 = arith.extui %0 : i1 to i32
    %2 = arith.sitofp %1 : i32 to f32
    %c0 = arith.constant 0 : index
    %c0_0 = arith.constant 0 : index
    %c0_1 = arith.constant 0 : index
    %3 = vector.load %arg2[%c0, %c0_0, %c0_1] : memref<2x8x16xf32, #tpu.memory_space<vmem>>, vector<2x8x16xf32>
    %4 = vector.shape_cast %3 : vector<2x8x16xf32> to vector<16x16xf32>
    %c0_2 = arith.constant 0 : index
    %c0_3 = arith.constant 0 : index
    %c0_4 = arith.constant 0 : index
    %5 = vector.load %arg3[%c0_2, %c0_3, %c0_4] : memref<2x8x16xf32, #tpu.memory_space<vmem>>, vector<2x8x16xf32>
    %6 = vector.shape_cast %5 : vector<2x8x16xf32> to vector<16x16xf32>
    %7 = vector.broadcast %2 : f32 to vector<16x16xf32>
    %8 = arith.mulf %6, %7 : vector<16x16xf32>
    %9 = tpu.iota {dimensions = array<i32: 1>} : vector<16x16xi32>
    %c1_i32 = arith.constant 1 : i32
    %10 = tpu.dynamic_rotate %4 by %c1_i32 dim 1 : vector<16x16xf32>, i32 -> vector<16x16xf32>
    %c1_i32_5 = arith.constant 1 : i32
    %11 = tpu.dynamic_rotate %8 by %c1_i32_5 dim 1 : vector<16x16xf32>, i32 -> vector<16x16xf32>
    %c1_i32_6 = arith.constant 1 : i32
    %12 = vector.broadcast %c1_i32_6 : i32 to vector<16x16xi32>
    %13 = arith.cmpi slt, %9, %12 : vector<16x16xi32>
    %14 = arith.select %13, %11, %10 : vector<16x16xi1>, vector<16x16xf32>
    %15 = vector.shape_cast %14 : vector<16x16xf32> to vector<2x8x16xf32>
    %c2_i32 = arith.constant 2 : i32
    %16 = tpu.dynamic_rotate %4 by %c2_i32 dim 1 : vector<16x16xf32>, i32 -> vector<16x16xf32>
    %c2_i32_7 = arith.constant 2 : i32
    %17 = tpu.dynamic_rotate %8 by %c2_i32_7 dim 1 : vector<16x16xf32>, i32 -> vector<16x16xf32>
    %c2_i32_8 = arith.constant 2 : i32
    %18 = vector.broadcast %c2_i32_8 : i32 to vector<16x16xi32>
    %19 = arith.cmpi slt, %9, %18 : vector<16x16xi32>
    %20 = arith.select %19, %17, %16 : vector<16x16xi1>, vector<16x16xf32>
    %21 = vector.shape_cast %20 : vector<16x16xf32> to vector<2x8x16xf32>
    %22 = tpu.concatenate %3, %15, %21 in 1 : vector<2x8x16xf32>, vector<2x8x16xf32>, vector<2x8x16xf32> -> vector<2x24x16xf32>
    %c0_9 = arith.constant 0 : index
    %c0_10 = arith.constant 0 : index
    %23 = vector.load %arg4[%c0_9, %c0_10] : memref<32x24xf32, #tpu.memory_space<vmem>>, vector<32x24xf32>
    %24 = vector.shape_cast %23 : vector<32x24xf32> to vector<1x32x24xf32>
    %25 = vector.shape_cast %24 : vector<1x32x24xf32> to vector<1x32x24xf32>
    %26 = vector.broadcast %25 : vector<1x32x24xf32> to vector<2x32x24xf32>
    "tpu.trace_start"() <{level = 10 : i32, message = "bgc,bcl->bgl"}> : () -> ()
    %cst = arith.constant dense<0.000000e+00> : vector<2x32x16xf32>
    %27 = tpu.matmul %26, %22, %cst {dimension_numbers = #tpu.dot_dimension_numbers<[2], [1], [1], [2], [0, 0, 0, 1, 1, 2], [0], [0]>} : vector<2x32x24xf32>, vector<2x24x16xf32>, vector<2x32x16xf32> -> vector<2x32x16xf32>
    "tpu.trace_stop"() : () -> ()
    %c0_11 = arith.constant 0 : index
    %c0_12 = arith.constant 0 : index
    %28 = vector.load %arg5[%c0_11, %c0_12] : memref<32x1xf32, #tpu.memory_space<vmem>>, vector<32x1xf32>
    %29 = vector.shape_cast %28 : vector<32x1xf32> to vector<1x32x1xf32>
    %30 = vector.broadcast %29 : vector<1x32x1xf32> to vector<2x32x16xf32>
    %31 = arith.addf %27, %30 : vector<2x32x16xf32>
    %32 = vector.extract_strided_slice %31 {offsets = [0, 0, 0], sizes = [2, 16, 16], strides = [1, 1, 1]} : vector<2x32x16xf32> to vector<2x16x16xf32>
    %cst_13 = arith.constant 0.000000e+00 : f32
    %33 = vector.broadcast %cst_13 : f32 to vector<2x16x16xf32>
    %34 = arith.maximumf %32, %33 : vector<2x16x16xf32>
    %35 = vector.extract_strided_slice %31 {offsets = [0, 16, 0], sizes = [2, 16, 16], strides = [1, 1, 1]} : vector<2x32x16xf32> to vector<2x16x16xf32>
    %36 = arith.negf %35 : vector<2x16x16xf32>
    %37 = math.exp %36 : vector<2x16x16xf32>
    %cst_14 = arith.constant 1.000000e+00 : f32
    %38 = vector.broadcast %cst_14 : f32 to vector<2x16x16xf32>
    %39 = arith.addf %38, %37 : vector<2x16x16xf32>
    %40 = arith.divf %38, %39 : vector<2x16x16xf32>
    %41 = arith.mulf %34, %40 : vector<2x16x16xf32>
    %c0_15 = arith.constant 0 : index
    %c0_16 = arith.constant 0 : index
    %42 = vector.load %arg6[%c0_15, %c0_16] : memref<8x16xf32, #tpu.memory_space<vmem>>, vector<8x16xf32>
    %43 = vector.shape_cast %42 : vector<8x16xf32> to vector<1x8x16xf32>
    %44 = vector.shape_cast %43 : vector<1x8x16xf32> to vector<1x8x16xf32>
    %45 = vector.broadcast %44 : vector<1x8x16xf32> to vector<2x8x16xf32>
    "tpu.trace_start"() <{level = 10 : i32, message = "boc,bcl->bol"}> : () -> ()
    %cst_17 = arith.constant dense<0.000000e+00> : vector<2x8x16xf32>
    %46 = tpu.matmul %45, %41, %cst_17 {dimension_numbers = #tpu.dot_dimension_numbers<[2], [1], [1], [2], [0, 0, 0, 1, 1, 2], [0], [0]>} : vector<2x8x16xf32>, vector<2x16x16xf32>, vector<2x8x16xf32> -> vector<2x8x16xf32>
    "tpu.trace_stop"() : () -> ()
    %c0_18 = arith.constant 0 : index
    %c0_19 = arith.constant 0 : index
    %47 = vector.load %arg7[%c0_18, %c0_19] : memref<8x1xf32, #tpu.memory_space<vmem>>, vector<8x1xf32>
    %48 = vector.shape_cast %47 : vector<8x1xf32> to vector<1x8x1xf32>
    %49 = vector.broadcast %48 : vector<1x8x1xf32> to vector<2x8x16xf32>
    %50 = arith.addf %46, %49 : vector<2x8x16xf32>
    %51 = arith.addf %3, %50 : vector<2x8x16xf32>
    %c0_20 = arith.constant 0 : index
    %c0_21 = arith.constant 0 : index
    %c0_22 = arith.constant 0 : index
    %52 = vector.load %arg8[%c0_20, %c0_21, %c0_22] : memref<2x8x16xf32, #tpu.memory_space<vmem>>, vector<2x8x16xf32>
    tpu.vector_store %arg8[%c0_20, %c0_21, %c0_22], %51 {strides = array<i32>} : memref<2x8x16xf32, #tpu.memory_space<vmem>>, vector<2x8x16xf32>,
    return
  }
  func.func @transform_0(%arg0: i32, %arg1: i32) -> (i32, i32, i32) {
    %c0_i32 = arith.constant 0 : i32
    %c0_i32_0 = arith.constant 0 : i32
    return %arg0, %c0_i32, %arg1 : i32, i32, i32
  }
  func.func @transform_1(%arg0: i32, %arg1: i32) -> (i32, i32, i32) {
    %c1_i32 = arith.constant 1 : i32
    %0 = arith.muli %arg1, %c1_i32 : i32
    %c1_i32_0 = arith.constant 1 : i32
    %1 = arith.subi %0, %c1_i32_0 : i32
    %c0_i32 = arith.constant 0 : i32
    %2 = arith.maxsi %1, %c0_i32 : i32
    %c0_i32_1 = arith.constant 0 : i32
    %c0_i32_2 = arith.constant 0 : i32
    return %arg0, %c0_i32_1, %2 : i32, i32, i32
  }
  func.func @transform_2(%arg0: i32, %arg1: i32) -> (i32, i32) {
    %c0_i32 = arith.constant 0 : i32
    %c0_i32_0 = arith.constant 0 : i32
    %c0_i32_1 = arith.constant 0 : i32
    return %c0_i32, %c0_i32_0 : i32, i32
  }
  func.func @transform_3(%arg0: i32, %arg1: i32) -> (i32, i32) {
    %c0_i32 = arith.constant 0 : i32
    %c0_i32_0 = arith.constant 0 : i32
    %c0_i32_1 = arith.constant 0 : i32
    return %c0_i32, %c0_i32_0 : i32, i32
  }
  func.func @transform_4(%arg0: i32, %arg1: i32) -> (i32, i32) {
    %c0_i32 = arith.constant 0 : i32
    %c0_i32_0 = arith.constant 0 : i32
    %c0_i32_1 = arith.constant 0 : i32
    return %c0_i32, %c0_i32_0 : i32, i32
  }
  func.func @transform_5(%arg0: i32, %arg1: i32) -> (i32, i32) {
    %c0_i32 = arith.constant 0 : i32
    %c0_i32_0 = arith.constant 0 : i32
    %c0_i32_1 = arith.constant 0 : i32
    return %c0_i32, %c0_i32_0 : i32, i32
  }
  func.func @transform_6(%arg0: i32, %arg1: i32) -> (i32, i32, i32) {
    %c0_i32 = arith.constant 0 : i32
    %c0_i32_0 = arith.constant 0 : i32
    return %arg0, %c0_i32, %arg1 : i32, i32, i32
  }
}

</mosaic_0001>

<llo_original>
// kernel: tpu_custom_call.1
$region0: #{tpu_custom_call.1}
  #allocation0 [shape = 'u32[]', space=smem, size = 0x4, offset = 0x4, fixed_abs, tag = 'smem constant byte address 0x4 - core index']
  #allocation1 [shape = 'u32[72,128]{1,0:T(1,128)}', space=vmem, size = 0x9000, scoped, tag = 'internal scratch']
  %s0 = inlined_call_operand.vmem [shape: f32[2,8,16], index: 0, kind: input, shape index: {}]
  %s1 = inlined_call_operand.vmem [shape: f32[2,8,16], index: 1, kind: input, shape index: {}]
  %s2 = inlined_call_operand.vmem [shape: f32[32,24], index: 2, kind: input, shape index: {}]
  %s3 = inlined_call_operand.vmem [shape: f32[32,1], index: 3, kind: input, shape index: {}]
  %s4 = inlined_call_operand.vmem [shape: f32[8,16], index: 4, kind: input, shape index: {}]
  %s5 = inlined_call_operand.vmem [shape: f32[8,1], index: 5, kind: input, shape index: {}]
  %s6 = inlined_call_operand.hbm [shape: f32[2,8,16], index: 6, kind: output, shape index: {}]
  %s7 = sld [smem:[#allocation0]]
  $region34: #{tpu_custom_call.1} parent=0
    _
  %s9 = ssub.s32 1, %s7
  %s10 = scalar_select 0, %s9, %s7
  $region1: #{tpu_custom_call.1} parent=0
    #allocation2 [shape = 'u8[8192]{0}', space=vmem, size = 0x2000, scoped, tag = 'output window, operand 0, single buffered']
    #allocation3 [shape = 's32[1]{0}', space=sflag, size = 0x4, scoped, tag = 'scoped memory for tpu_custom_call.1']
    %11 = vsyncpa [#allocation3], 0
    // Predicated region
    $region2: #{tpu_custom_call.1} parent=1 // pred_check
      _
    $region3: #{tpu_custom_call.1} parent=1 // pred_check_branch
      %13 = sbr.rel (0) target = $region5
    $region4: #{tpu_custom_call.1} parent=1 // pred_region
      _
    $region5: #{tpu_custom_call.1} parent=1 // pred_fallthru
      _
    // Predicated region
    $region6: #{tpu_custom_call.1} parent=1 // pred_check
      _
    $region7: #{tpu_custom_call.1} parent=1 // pred_check_branch
      %15 = sbr.rel (0) target = $region9
    $region8: #{tpu_custom_call.1} parent=1 // pred_region
      %s16 = ssub.s32 0, 1
      %p17 = scmp.gt.s32.totalorder %s16, 0
      %s18 = scalar_select %p17, %s16, 0
      %p19 = scmp.lt.s32.totalorder %s18, 0
      %s20 = scalar_select %p19, %s18, 0
      %s21 = smul.addr %s20, 8
      %s22 = scalar_lea.vmem %s1, %s21
      %s23 = ssub.s32 0, 1
      %p24 = scmp.gt.s32.totalorder %s23, 0
      %s25 = scalar_select %p24, %s23, 0
    $region9: #{tpu_custom_call.1} parent=1 // pred_fallthru
      _
    // Predicated region
    $region10: #{tpu_custom_call.1} parent=1 // pred_check
      _
    $region11: #{tpu_custom_call.1} parent=1 // pred_check_branch
      %27 = sbr.rel (0) target = $region13
    $region12: #{tpu_custom_call.1} parent=1 // pred_region
      _
    $region13: #{tpu_custom_call.1} parent=1 // pred_fallthru
      _
    // Predicated region
    $region14: #{tpu_custom_call.1} parent=1 // pred_check
      _
    $region15: #{tpu_custom_call.1} parent=1 // pred_check_branch
      %29 = sbr.rel (0) target = $region17
    $region16: #{tpu_custom_call.1} parent=1 // pred_region
      _
    $region17: #{tpu_custom_call.1} parent=1 // pred_fallthru
      _
    // Predicated region
    $region18: #{tpu_custom_call.1} parent=1 // pred_check
      _
    $region19: #{tpu_custom_call.1} parent=1 // pred_check_branch
      %31 = sbr.rel (0) target = $region21
    $region20: #{tpu_custom_call.1} parent=1 // pred_region
      _
    $region21: #{tpu_custom_call.1} parent=1 // pred_fallthru
      _
    // Predicated region
    $region22: #{tpu_custom_call.1} parent=1 // pred_check
      _
    $region23: #{tpu_custom_call.1} parent=1 // pred_check_branch
      %33 = sbr.rel (0) target = $region25
    $region24: #{tpu_custom_call.1} parent=1 // pred_region
      _
    $region25: #{tpu_custom_call.1} parent=1 // pred_fallthru
      _
    %s34 = ssub.s32 0, 1
    %p35 = scmp.gt.s32.totalorder %s34, 0
    %s36 = scalar_select %p35, %s34, 0
    %p37 = scmp.lt.s32.totalorder %s36, 0
    %s38 = scalar_select %p37, %s36, 0
    %s39 = smul.addr %s38, 8
    %s40 = scalar_lea.vmem %s1, %s39
    %s41 = ssub.s32 0, 1
    %p42 = scmp.gt.s32.totalorder %s41, 0
    %s43 = scalar_select %p42, %s41, 0
    %p44 = scmp.lt.s32.totalorder %s43, 0
    %s45 = scalar_select %p44, %s43, 0
    %s46 = smul.addr %s45, 8
    %s47 = scalar_lea.vmem %s1, %s46
    %s48 = ssub.s32 0, 1
    %p49 = scmp.gt.s32.totalorder %s48, 0
    %s50 = scalar_select %p49, %s48, 0
    %p51 = scmp.gt.s32.totalorder 0, 0
    %s52 = scalar_select %p51, 1, 0
    %s53 = scvt.s32.f32 %s52
    %v54 = vld [vmem:[%s0] sm:$0xff]
    %v55 = vld [vmem:[%s0 + $0x8] sm:$0xff]
    %v56 = vld [vmem:[%s47] sm:$0xff]
    %v57 = vld [vmem:[%s47 + $0x8] sm:$0xff]
    %v58 = vstv %s53
    %v59 = vmul.f32 %v56, %v58
    %v60 = vmul.f32 %v57, %v58
    %v61 = vlaneseq
    %v62 = vand.u32 %v61, 127
    %vm63 = vcmask 1047680
    %64 = vrot.lane.b32.xlu0 %v54, 16
    %v65 = vpop.permute.xlu0 %64
    %v66 = vsel %vm63, %v65, %v54
    %67 = vrot.lane.b32.xlu0 %v55, 16
    %v68 = vpop.permute.xlu0 %67
    %v69 = vsel %vm63, %v68, %v55
    %70 = vrot.lane.b32.xlu0 %v66, 16
    %v71 = vpop.permute.xlu0 %70
    %72 = vrot.lane.b32.xlu0 %v69, 16
    %v73 = vpop.permute.xlu0 %72
    %v74 = vsel %vm63, %v71, %v54
    %v75 = vsel %vm63, %v73, %v55
    %76 = vrot.lane.b32.xlu0 %v59, 16
    %v77 = vpop.permute.xlu0 %76
    %v78 = vsel %vm63, %v77, %v59
    %79 = vrot.lane.b32.xlu0 %v60, 16
    %v80 = vpop.permute.xlu0 %79
    %v81 = vsel %vm63, %v80, %v60
    %82 = vrot.lane.b32.xlu0 %v78, 16
    %v83 = vpop.permute.xlu0 %82
    %84 = vrot.lane.b32.xlu0 %v81, 16
    %v85 = vpop.permute.xlu0 %84
    %v86 = vsel %vm63, %v83, %v59
    %v87 = vsel %vm63, %v85, %v60
    %vm88 = vcmp.lt.s32.totalorder %v62, 1
    %91 = vrot.lane.b32.xlu0 %v86, 113
    %v92 = vpop.permute.xlu0 %91
    %93 = vrot.lane.b32.xlu0 %v87, 113
    %v94 = vpop.permute.xlu0 %93
    %99 = vrot.lane.b32.xlu0 %v74, 113
    %v100 = vpop.permute.xlu0 %99
    %101 = vrot.lane.b32.xlu0 %v75, 113
    %v102 = vpop.permute.xlu0 %101
    %v105 = vsel %vm88, %v92, %v100
    %v106 = vsel %vm88, %v94, %v102
    %vm107 = vcmp.lt.s32.totalorder %v62, 2
    %108 = vrot.lane.b32.xlu0 %v86, 114
    %v109 = vpop.permute.xlu0 %108
    %110 = vrot.lane.b32.xlu0 %v87, 114
    %v111 = vpop.permute.xlu0 %110
    %114 = vrot.lane.b32.xlu0 %v74, 114
    %v115 = vpop.permute.xlu0 %114
    %116 = vrot.lane.b32.xlu0 %v75, 114
    %v117 = vpop.permute.xlu0 %116
    %v120 = vsel %vm107, %v109, %v115
    %v121 = vsel %vm107, %v111, %v117
    %v122 = vld [vmem:[%s2] sm:$0xff]
    %v123 = vld [vmem:[%s2 + $0x8] sm:$0xff]
    %v124 = vld [vmem:[%s2 + $0x10] sm:$0xff]
    %v125 = vld [vmem:[%s2 + $0x18] sm:$0xff]
    %v126 = vld [vmem:[%s3] sm:$0xff]
    %v127 = vld [vmem:[%s3 + $0x8] sm:$0xff]
    %v128 = vld [vmem:[%s3 + $0x10] sm:$0xff]
    %v129 = vld [vmem:[%s3 + $0x18] sm:$0xff]
    %131 = vset.pattern.permute.xlu0 0
    %132 = vperm.xlu0 %131, %v126
    %v133 = vpop.permute.xlu0 %132
    %136 = vset.pattern.permute.xlu0 0
    %137 = vperm.xlu0 %136, %v127
    %v138 = vpop.permute.xlu0 %137
    %141 = vset.pattern.permute.xlu0 0
    %142 = vperm.xlu0 %141, %v128
    %v143 = vpop.permute.xlu0 %142
    %146 = vset.pattern.permute.xlu0 0
    %147 = vperm.xlu0 %146, %v129
    %v148 = vpop.permute.xlu0 %147
    %vm150 = vcmask 195584
    %v152 = vsel %vm150, %v122, 0
    %v155 = vsel %vm150, %v123, 0
    %v158 = vsel %vm150, %v124, 0
    %v161 = vsel %vm150, %v125, 0
    %163 = vmatpush.msra.mxu0 0.0
    %164 = vmatpush.msra.mxu0 0.0
    %165 = vmatpush.msra.mxu0 0.0
    %166 = vmatpush.msra.mxu0 0.0
    %167 = vmatpush.msra.mxu0 0.0
    %168 = vmatpush.msra.mxu0 0.0
    %169 = vmatpush.msra.mxu0 0.0
    %170 = vmatpush.msra.mxu0 0.0
    %171 = vmatpush.msra.mxu0 0.0
    %172 = vmatpush.msra.mxu0 0.0
    %173 = vmatpush.msra.mxu0 0.0
    %174 = vmatpush.msra.mxu0 0.0
    %175 = vmatpush.msra.mxu0 0.0
    %176 = vmatpush.msra.mxu0 %v120
    %177 = vmatpush.msra.mxu0 %v105
    %178 = vmatpush.msra.mxu0 %v54
    %179 = vmatmul.f32.gmra.mxu0 %v152
    %v180 = vpop.f32.mrf.mxu0
    %v181 = vadd.f32 %v133, %v180
    %182 = vmatmul.f32.gmra.mxu0 %v155
    %v183 = vpop.f32.mrf.mxu0
    %v184 = vadd.f32 %v138, %v183
    %185 = vmatmul.f32.gmra.mxu0 %v158
    %v186 = vpop.f32.mrf.mxu0
    %v187 = vadd.f32 %v143, %v186
    %188 = vmatmul.f32.gmra.mxu0 %v161
    %v189 = vpop.f32.mrf.mxu0
    %v190 = vadd.f32 %v148, %v189
    %191 = vdwg.mxu0
    %192 = vmatpush.msra.mxu0 0.0
    %193 = vmatpush.msra.mxu0 0.0
    %194 = vmatpush.msra.mxu0 0.0
    %195 = vmatpush.msra.mxu0 0.0
    %196 = vmatpush.msra.mxu0 0.0
    %197 = vmatpush.msra.mxu0 0.0
    %198 = vmatpush.msra.mxu0 0.0
    %199 = vmatpush.msra.mxu0 0.0
    %200 = vmatpush.msra.mxu0 0.0
    %201 = vmatpush.msra.mxu0 0.0
    %202 = vmatpush.msra.mxu0 0.0
    %203 = vmatpush.msra.mxu0 0.0
    %204 = vmatpush.msra.mxu0 0.0
    %205 = vmatpush.msra.mxu0 %v121
    %206 = vmatpush.msra.mxu0 %v106
    %207 = vmatpush.msra.mxu0 %v55
    %208 = vmatmul.f32.gmra.mxu0 %v152
    %v209 = vpop.f32.mrf.mxu0
    %v210 = vadd.f32 %v133, %v209
    %211 = vmatmul.f32.gmra.mxu0 %v155
    %v212 = vpop.f32.mrf.mxu0
    %v213 = vadd.f32 %v138, %v212
    %214 = vmatmul.f32.gmra.mxu0 %v158
    %v215 = vpop.f32.mrf.mxu0
    %v216 = vadd.f32 %v143, %v215
    %217 = vmatmul.f32.gmra.mxu0 %v161
    %v218 = vpop.f32.mrf.mxu0
    %v219 = vadd.f32 %v148, %v218
    %220 = vdwg.mxu0
    %v221 = vmax.f32 %v181, 0.0
    %v222 = vmax.f32 %v184, 0.0
    %v223 = vmax.f32 %v210, 0.0
    %v224 = vmax.f32 %v213, 0.0
    %v225 = vxor.u32 %v187, 2147483648
    %v226 = vxor.u32 %v190, 2147483648
    %v227 = vxor.u32 %v216, 2147483648
    %v228 = vxor.u32 %v219, 2147483648
    %v229 = vmul.f32 %v225, 1.442695
    %v230 = vpow.pop %v229
    %v231 = vmul.f32 %v226, 1.442695
    %v232 = vpow.pop %v231
    %v233 = vmul.f32 %v227, 1.442695
    %v234 = vpow.pop %v233
    %v235 = vmul.f32 %v228, 1.442695
    %v236 = vpow.pop %v235
    %v237 = vadd.f32 %v230, 1.0
    %v238 = vadd.f32 %v232, 1.0
    %v239 = vadd.f32 %v234, 1.0
    %v240 = vadd.f32 %v236, 1.0
    %v241 = vrcp.pop %v237
    %v242 = vmul.f32 %v237, %v241
    %v243 = vsub.f32 1.0, %v242
    %v244 = vmul.f32 %v241, %v243
    %v245 = vadd.f32 %v241, %v244
    %vm246 = vweird.f32 %v237
    %vm247 = vweird.f32 %v241
    %vm248 = vmor %vm246, %vm247
    %v249 = vsel %vm248, %v241, %v245
    %v250 = vand.u32 2147483647, %v237
    %vm251 = vcmp.eq.f32.partialorder %v250, 8.507059e+37
    %v252 = vand.u32 %v237, 2147483648
    %v253 = vor.u32 1.1754944e-38, %v252
    %v254 = vsel %vm251, %v253, %v249
    %v255 = vmul.f32 1.0, %v254
    %v256 = vrcp.pop %v238
    %v257 = vmul.f32 %v238, %v256
    %v258 = vsub.f32 1.0, %v257
    %v259 = vmul.f32 %v256, %v258
    %v260 = vadd.f32 %v256, %v259
    %vm261 = vweird.f32 %v238
    %vm262 = vweird.f32 %v256
    %vm263 = vmor %vm261, %vm262
    %v264 = vsel %vm263, %v256, %v260
    %v265 = vand.u32 2147483647, %v238
    %vm266 = vcmp.eq.f32.partialorder %v265, 8.507059e+37
    %v267 = vand.u32 %v238, 2147483648
    %v268 = vor.u32 1.1754944e-38, %v267
    %v269 = vsel %vm266, %v268, %v264
    %v270 = vmul.f32 1.0, %v269
    %v271 = vrcp.pop %v239
    %v272 = vmul.f32 %v239, %v271
    %v273 = vsub.f32 1.0, %v272
    %v274 = vmul.f32 %v271, %v273
    %v275 = vadd.f32 %v271, %v274
    %vm276 = vweird.f32 %v239
    %vm277 = vweird.f32 %v271
    %vm278 = vmor %vm276, %vm277
    %v279 = vsel %vm278, %v271, %v275
    %v280 = vand.u32 2147483647, %v239
    %vm281 = vcmp.eq.f32.partialorder %v280, 8.507059e+37
    %v282 = vand.u32 %v239, 2147483648
    %v283 = vor.u32 1.1754944e-38, %v282
    %v284 = vsel %vm281, %v283, %v279
    %v285 = vmul.f32 1.0, %v284
    %v286 = vrcp.pop %v240
    %v287 = vmul.f32 %v240, %v286
    %v288 = vsub.f32 1.0, %v287
    %v289 = vmul.f32 %v286, %v288
    %v290 = vadd.f32 %v286, %v289
    %vm291 = vweird.f32 %v240
    %vm292 = vweird.f32 %v286
    %vm293 = vmor %vm291, %vm292
    %v294 = vsel %vm293, %v286, %v290
    %v295 = vand.u32 2147483647, %v240
    %vm296 = vcmp.eq.f32.partialorder %v295, 8.507059e+37
    %v297 = vand.u32 %v240, 2147483648
    %v298 = vor.u32 1.1754944e-38, %v297
    %v299 = vsel %vm296, %v298, %v294
    %v300 = vmul.f32 1.0, %v299
    %v301 = vmul.f32 %v221, %v255
    %v302 = vmul.f32 %v222, %v270
    %v303 = vmul.f32 %v223, %v285
    %v304 = vmul.f32 %v224, %v300
    %v305 = vld [vmem:[%s4] sm:$0xff]
    %v306 = vld [vmem:[%s5] sm:$0xff]
    %308 = vset.pattern.permute.xlu0 0
    %309 = vperm.xlu0 %308, %v306
    %v310 = vpop.permute.xlu0 %309
    %vm312 = vcmask 130048
    %v314 = vsel %vm312, %v305, 0
    %316 = vmatpush.msra.mxu0 0.0
    %317 = vmatpush.msra.mxu0 0.0
    %318 = vmatpush.msra.mxu0 0.0
    %319 = vmatpush.msra.mxu0 0.0
    %320 = vmatpush.msra.mxu0 0.0
    %321 = vmatpush.msra.mxu0 0.0
    %322 = vmatpush.msra.mxu0 0.0
    %323 = vmatpush.msra.mxu0 0.0
    %324 = vmatpush.msra.mxu0 0.0
    %325 = vmatpush.msra.mxu0 0.0
    %326 = vmatpush.msra.mxu0 0.0
    %327 = vmatpush.msra.mxu0 0.0
    %328 = vmatpush.msra.mxu0 0.0
    %329 = vmatpush.msra.mxu0 0.0
    %330 = vmatpush.msra.mxu0 %v302
    %331 = vmatpush.msra.mxu0 %v301
    %332 = vmatmul.f32.gmra.mxu0 %v314
    %v333 = vpop.f32.mrf.mxu0
    %v334 = vadd.f32 %v310, %v333
    %335 = vdwg.mxu0
    %336 = vmatpush.msra.mxu0 0.0
    %337 = vmatpush.msra.mxu0 0.0
    %338 = vmatpush.msra.mxu0 0.0
    %339 = vmatpush.msra.mxu0 0.0
    %340 = vmatpush.msra.mxu0 0.0
    %341 = vmatpush.msra.mxu0 0.0
    %342 = vmatpush.msra.mxu0 0.0
    %343 = vmatpush.msra.mxu0 0.0
    %344 = vmatpush.msra.mxu0 0.0
    %345 = vmatpush.msra.mxu0 0.0
    %346 = vmatpush.msra.mxu0 0.0
    %347 = vmatpush.msra.mxu0 0.0
    %348 = vmatpush.msra.mxu0 0.0
    %349 = vmatpush.msra.mxu0 0.0
    %350 = vmatpush.msra.mxu0 %v304
    %351 = vmatpush.msra.mxu0 %v303
    %352 = vmatmul.f32.gmra.mxu0 %v314
    %v353 = vpop.f32.mrf.mxu0
    %v354 = vadd.f32 %v310, %v353
    %355 = vdwg.mxu0
    %v356 = vadd.f32 %v54, %v334
    %v357 = vadd.f32 %v55, %v354
    %358 = vst.msk [vmem:[#allocation2] sm:$0xff] %vm312, %v356
    %359 = vst.msk [vmem:[#allocation2 + $0x8] sm:$0xff] %vm312, %v357
    // Predicated region
    $region26: #{tpu_custom_call.1} parent=1 // pred_check
      _
    $region27: #{tpu_custom_call.1} parent=1 // pred_check_branch
      %361 = sbr.rel (0) target = $region29
    $region28: #{tpu_custom_call.1} parent=1 // pred_region
      %363 = vsyncadd [#allocation3], 0
      %s364 = sshll.u32 [#allocation2], 4
      %s365 = int_to_ptr.vmem [resolvable:$true] %s364
      %s366 = sshll.u32 %s6, 4
      %s367 = int_to_ptr.hbm [resolvable:$true] %s366
      %372 = dma.vmem_to_hbm [thread:$0]  %s365, 256, %s367, [#allocation3], 128, 128, 8
    $region29: #{tpu_custom_call.1} parent=1 // pred_fallthru
      _
    // Predicated region
    $region30: #{tpu_custom_call.1} parent=1 // pred_check
      _
    $region31: #{tpu_custom_call.1} parent=1 // pred_check_branch
      %374 = sbr.rel (0) target = $region33
    $region32: #{tpu_custom_call.1} parent=1 // pred_region
      %376 = dma.done [#allocation3], 256
    $region33: #{tpu_custom_call.1} parent=1 // pred_fallthru
      _
    %377 = vsyncpa [#allocation3], 1

</llo_original>
